<compile_context>
chip_gen: v7x
topology: tpu7x:2x2x1
jax: 0.10.0
libtpu: 0.0.40
codegen_flags: <defaults>
</compile_context>

<pallas_src>
import math

import numpy as np
import jax
import jax.numpy as jnp
from jax.experimental import pallas as pl
from jax.experimental.pallas import tpu as pltpu

EPS = 1e-5


def _round_up(x, m):
    return ((x + m - 1) // m) * m


def _vmem_capacity_bytes():
    try:
        cap = int(pltpu.get_tpu_info().vmem_capacity_bytes)
        if cap > 0:
            return cap
    except Exception:
        pass
    return 64 << 20  # conservative: v7x per-TensorCore VMEM


def _working_set_bytes(batch, h1, tile_n, out_bytes):
    """Double-buffered per-step live bytes for the gridded head kernel."""
    return (2 * (3 * h1 * tile_n * 2          # packed bf16 head weights
                 + 3 * batch * tile_n * out_bytes  # three output tiles
                 + 5 * tile_n * 4)            # b_pi, g/beta for mu & theta
            + 3 * batch * tile_n * 4          # in-kernel f32 matmul result
            + batch * h1 * 2)                 # resident bf16 hidden state


def _choose_tile_n(batch, h1, n_out, out_bytes):
    """Largest 128-multiple feature tile that fits the per-generation budget."""
    cap = _vmem_capacity_bytes()
    budget = (48 << 20) if cap >= (100 << 20) else (20 << 20)
    tile = 2048
    while tile > 128:
        if _working_set_bytes(batch, h1, tile, out_bytes) <= budget:
            break
        tile //= 2
    return min(tile, _round_up(n_out, 128))  # don't over-pad tiny problems


def _dim_semantics(n_tiles):
    """CORE_PARALLEL on v7x (2 TCs) so the stateless n_out axis is split across
    cores; plain 'parallel' on single-TC v5e/v6e."""
    try:
        kind = jax.devices()[0].device_kind.lower()
    except Exception:
        kind = ""
    if "v7" in kind and n_tiles >= 2 and hasattr(pltpu, "CORE_PARALLEL"):
        return (pltpu.CORE_PARALLEL,)
    return ("parallel",)


# ------------------------------ kernel -------------------------------------


def _decoder_head_kernel(h_ref, wpk_ref, bpi_ref,
                         gmu_ref, bemu_ref, gth_ref, beth_ref,
                         mu_ref, theta_ref, pi_ref):
    inv_b = 1.0 / h_ref.shape[0]

    # One fused (B, H1) x (H1, 3*tile_n) bf16 MXU pass for the three heads.
    h = h_ref[...]                       # (B, H1)        bf16
    w = wpk_ref[...]                     # (H1, 3*tile_n) bf16 (tile axis squeezed)
    y = jnp.dot(h, w, preferred_element_type=jnp.float32)

    tn = mu_ref.shape[1]
    y_mu = y[:, :tn]                     # biases before BN cancel -> omitted
    y_th = y[:, tn:2 * tn]
    y_pi = y[:, 2 * tn:] + bpi_ref[...]  # pi is Linear only -> keeps its bias

    def batch_norm(v, g_ref, b_ref):
        # Centered two-pass variance (avoids E[x^2]-E[x]^2 cancellation).
        m = jnp.sum(v, axis=0, keepdims=True) * inv_b
        c = v - m
        var = jnp.sum(c * c, axis=0, keepdims=True) * inv_b
        return c * jax.lax.rsqrt(var + EPS) * g_ref[...] + b_ref[...]

    # mu = exp(BN(.))
    mu_ref[...] = jnp.exp(batch_norm(y_mu, gmu_ref, bemu_ref)).astype(mu_ref.dtype)
    # theta = softplus(BN(.))  (numerically stable softplus)
    t = batch_norm(y_th, gth_ref, beth_ref)
    theta_ref[...] = (jnp.maximum(t, 0.0)
                      + jnp.log1p(jnp.exp(-jnp.abs(t)))).astype(theta_ref.dtype)
    # pi = Linear only
    pi_ref[...] = y_pi.astype(pi_ref.dtype)


# --------------------------- wrapper / packing ------------------------------


def pack_head_weights(params, tile_n, weight_dtype=jnp.bfloat16):
    """Pack [w_mu | w_th | w_pi] per feature tile -> (n_tiles, H1, 3*tile_n).
    Call ONCE per parameter update and reuse across forward calls (the re-layout
    is a full read+write pass over all head weights)."""
    h1, n_out = params["w_mu"].shape
    n_pad = _round_up(n_out, tile_n)
    n_tiles = n_pad // tile_n

    def pad_cols(x, fill=0.0):
        return jnp.pad(x, ((0, 0), (0, n_pad - x.shape[1])), constant_values=fill)

    def per_tile(w):
        return pad_cols(w).reshape(h1, n_tiles, tile_n).transpose(1, 0, 2)

    w_pk = jnp.concatenate(
        [per_tile(params["w_mu"]), per_tile(params["w_th"]), per_tile(params["w_pi"])],
        axis=2).astype(weight_dtype)

    return dict(
        w_pk=w_pk,
        b_pi=pad_cols(params["b_pi"]),
        g_mu=pad_cols(params["bn_mu_g"], 1.0),
        be_mu=pad_cols(params["bn_mu_b"]),
        g_th=pad_cols(params["bn_th_g"], 1.0),
        be_th=pad_cols(params["bn_th_b"]),
        tile_n=tile_n, n_out=n_out, n_pad=n_pad, n_tiles=n_tiles, h1=h1,
    )


def _backbone_xla(z, params):
    """Tiny backbone (two K<=32 matmuls + BN + ReLU) in plain XLA, computed once.
    b1/b2 are dropped: per-feature constants cancel exactly in the batch-stat BN."""
    h = jnp.dot(jnp.dot(z, params["w1"]), params["w2"])
    m = jnp.mean(h, axis=0, keepdims=True)
    c = h - m
    v = jnp.mean(c * c, axis=0, keepdims=True)
    h = c * jax.lax.rsqrt(v + EPS) * params["bn2_g"] + params["bn2_b"]
    return jnp.maximum(h, 0.0)


def px_given_z_decoder_forward(z, params, packed=None, tile_n=None,
                               out_dtype=jnp.float32):
    """z: (B, n_in) float32. Returns (mu, theta, pi), each (B, n_out)."""
    batch = z.shape[0]
    h1 = params["w2"].shape[1]
    n_out = params["w_mu"].shape[1]
    out_bytes = np.dtype(out_dtype).itemsize

    if packed is None:
        if tile_n is None:
            tile_n = _choose_tile_n(batch, h1, n_out, out_bytes)
        packed = pack_head_weights(params, tile_n)
    tile_n = packed["tile_n"]
    n_pad = packed["n_pad"]
    n_tiles = packed["n_tiles"]

    # Backbone once, cast to bf16 once.
    h = _backbone_xla(z, params).astype(jnp.bfloat16)

    h_spec = pl.BlockSpec((batch, h1), lambda i: (0, 0))
    w_spec = pl.BlockSpec((pl.Squeezed(), h1, 3 * tile_n), lambda i: (i, 0, 0))
    vec_spec = pl.BlockSpec((1, tile_n), lambda i: (0, i))
    out_spec = pl.BlockSpec((batch, tile_n), lambda i: (0, i))
    out_sds = jax.ShapeDtypeStruct((batch, n_pad), out_dtype)

    # VMEM limit: generation-aware, with explicit headroom below capacity.
    cap = _vmem_capacity_bytes()
    headroom = (16 << 20) if cap <= (80 << 20) else (28 << 20)
    working = _working_set_bytes(batch, h1, tile_n, out_bytes)
    vmem_limit = int(min(cap - headroom, max(32 << 20, 2 * working)))

    w_bytes = int(packed["w_pk"].size) * packed["w_pk"].dtype.itemsize
    cost = pl.CostEstimate(
        flops=int(2 * batch * h1 * 3 * n_pad + 10 * batch * n_pad),
        transcendentals=int(3 * batch * n_pad),
        bytes_accessed=int(batch * h1 * 2 + w_bytes + 5 * n_pad * 4
                           + 3 * batch * n_pad * out_bytes),
    )

    mu, theta, pi = pl.pallas_call(
        _decoder_head_kernel,
        out_shape=(out_sds, out_sds, out_sds),
        grid=(n_tiles,),
        in_specs=[h_spec, w_spec,
                  vec_spec,                       # b_pi
                  vec_spec, vec_spec,             # g_mu, be_mu
                  vec_spec, vec_spec],            # g_th, be_th
        out_specs=(out_spec, out_spec, out_spec),
        compiler_params=pltpu.CompilerParams(
            dimension_semantics=_dim_semantics(n_tiles),
            vmem_limit_bytes=vmem_limit),
        cost_estimate=cost,
    )(h, packed["w_pk"], packed["b_pi"],
      packed["g_mu"], packed["be_mu"], packed["g_th"], packed["be_th"])

    if n_pad == n_out:
        return mu, theta, pi
    return mu[:, :n_out], theta[:, :n_out], pi[:, :n_out]


# ------------------------- parameter init / reference -------------------------


def _linear_init(key, fan_in, fan_out):
    # PyTorch nn.Linear default init: U(-1/sqrt(fan_in), 1/sqrt(fan_in)).
    kw, kb = jax.random.split(key)
    bound = 1.0 / math.sqrt(fan_in)
    # Stored transposed (fan_in, fan_out) so the kernel does x @ W directly.
    w = jax.random.uniform(kw, (fan_in, fan_out), jnp.float32, -bound, bound)
    b = jax.random.uniform(kb, (1, fan_out), jnp.float32, -bound, bound)
    return w, b


def init_params(key, n_in, n_hidden, n_out):
    # TODO(synk): variable-depth n_hidden loop; this covers the 2-hidden-layer case.
    assert len(n_hidden) == 2, "kernel instantiated for two hidden layers"
    keys = jax.random.split(key, 5)
    w1, b1 = _linear_init(keys[0], n_in, n_hidden[0])
    w2, b2 = _linear_init(keys[1], n_hidden[0], n_hidden[1])
    w_mu, b_mu = _linear_init(keys[2], n_hidden[1], n_out)
    w_th, b_th = _linear_init(keys[3], n_hidden[1], n_out)
    w_pi, b_pi = _linear_init(keys[4], n_hidden[1], n_out)
    return dict(
        w1=w1, b1=b1,
        w2=w2, b2=b2,
        bn2_g=jnp.ones((1, n_hidden[1]), jnp.float32),
        bn2_b=jnp.zeros((1, n_hidden[1]), jnp.float32),
        w_mu=w_mu, b_mu=b_mu,
        bn_mu_g=jnp.ones((1, n_out), jnp.float32),
        bn_mu_b=jnp.zeros((1, n_out), jnp.float32),
        w_th=w_th, b_th=b_th,
        bn_th_g=jnp.ones((1, n_out), jnp.float32),
        bn_th_b=jnp.zeros((1, n_out), jnp.float32),
        w_pi=w_pi, b_pi=b_pi,
    )


def _reference(z, params):
    # Faithful f32 reference (keeps all biases; BN-cancellation makes the
    # bias-free optimized path mathematically identical).
    def bn(y, g, b):
        m = y.mean(0, keepdims=True)
        v = ((y - m) ** 2).mean(0, keepdims=True)
        return (y - m) / jnp.sqrt(v + EPS) * g + b

    h = z @ params["w1"] + params["b1"]
    h = h @ params["w2"] + params["b2"]
    h = jnp.maximum(bn(h, params["bn2_g"], params["bn2_b"]), 0.0)
    mu = jnp.exp(bn(h @ params["w_mu"] + params["b_mu"],
                    params["bn_mu_g"], params["bn_mu_b"]))
    t = bn(h @ params["w_th"] + params["b_th"],
           params["bn_th_g"], params["bn_th_b"])
    theta = jnp.maximum(t, 0.0) + jnp.log1p(jnp.exp(-jnp.abs(t)))
    pi = h @ params["w_pi"] + params["b_pi"]
    return mu, theta, pi


if __name__ == "__main__":
    key = jax.random.PRNGKey(0)

    # Case 1: toy shapes consistent with the module (single feature tile).
    B, n_in, n_hidden, n_out = 8, 16, [32, 32], 16
    kz, kp, kz2, kp2 = jax.random.split(key, 4)
    z = jax.random.normal(kz, (B, n_in), jnp.float32)
    params = init_params(kp, n_in, n_hidden, n_out)
    mu, theta, pi = px_given_z_decoder_forward(z, params)
    jax.block_until_ready((mu, theta, pi))
    r_mu, r_th, r_pi = _reference(z, params)
    assert mu.shape == (B, n_out) and theta.shape == (B, n_out) and pi.shape == (B, n_out)
    assert bool(jnp.all(mu > 0)) and bool(jnp.all(theta > 0))
    assert bool(jnp.allclose(mu, r_mu, rtol=0.1, atol=0.1))
    assert bool(jnp.allclose(theta, r_th, rtol=0.1, atol=0.1))
    assert bool(jnp.allclose(pi, r_pi, rtol=0.1, atol=0.1))

    # Case 2: multi-tile (gridded) path, with weights pre-packed ONCE and
    # reused across forward calls.
    n_out2 = 200
    z2 = jax.random.normal(kz2, (B, n_in), jnp.float32)
    params2 = init_params(kp2, n_in, n_hidden, n_out2)
    packed2 = pack_head_weights(params2, tile_n=128)   # pack at param-update time
    mu2, th2, pi2 = px_given_z_decoder_forward(z2, params2, packed=packed2)
    jax.block_until_ready((mu2, th2, pi2))
    r_mu2, r_th2, r_pi2 = _reference(z2, params2)
    assert mu2.shape == (B, n_out2)
    assert bool(jnp.allclose(mu2, r_mu2, rtol=0.1, atol=0.1))
    assert bool(jnp.allclose(th2, r_th2, rtol=0.1, atol=0.1))
    assert bool(jnp.allclose(pi2, r_pi2, rtol=0.1, atol=0.1))

    print("KERNEL_OK")
</pallas_src>

<mosaic_0001>
module attributes {stable_mosaic.version = 11 : i64} {
  func.func @_decoder_head_kernel(%arg0: i32, %arg1: memref<8x32xbf16, #tpu.memory_space<vmem>>, %arg2: memref<1x32x384xbf16, #tpu.memory_space<vmem>>, %arg3: memref<1x128xf32, #tpu.memory_space<vmem>>, %arg4: memref<1x128xf32, #tpu.memory_space<vmem>>, %arg5: memref<1x128xf32, #tpu.memory_space<vmem>>, %arg6: memref<1x128xf32, #tpu.memory_space<vmem>>, %arg7: memref<1x128xf32, #tpu.memory_space<vmem>>, %arg8: memref<8x128xf32, #tpu.memory_space<vmem>>, %arg9: memref<8x128xf32, #tpu.memory_space<vmem>>, %arg10: memref<8x128xf32, #tpu.memory_space<vmem>>) attributes {dimension_semantics = [#tpu.dimension_semantics<parallel>], iteration_bounds = array<i64: 1>, scalar_prefetch = 0 : i64, scratch_operands = 0 : i64, tpu.core_type = #tpu.core_type<tc>, window_params = [{pipeline_mode = #tpu.pipeline_mode<synchronous>, transform_indices = @transform_0, window_bounds = array<i64: 8, 32>}, {transform_indices = @transform_1, window_bounds = array<i64: 1, 32, 384>}, {transform_indices = @transform_2, window_bounds = array<i64: 1, 128>}, {transform_indices = @transform_3, window_bounds = array<i64: 1, 128>}, {transform_indices = @transform_4, window_bounds = array<i64: 1, 128>}, {transform_indices = @transform_5, window_bounds = array<i64: 1, 128>}, {transform_indices = @transform_6, window_bounds = array<i64: 1, 128>}, {transform_indices = @transform_7, window_bounds = array<i64: 8, 128>}, {transform_indices = @transform_8, window_bounds = array<i64: 8, 128>}, {transform_indices = @transform_9, window_bounds = array<i64: 8, 128>}]} {
    %c0 = arith.constant 0 : index
    %c0_0 = arith.constant 0 : index
    %0 = vector.load %arg1[%c0, %c0_0] : memref<8x32xbf16, #tpu.memory_space<vmem>>, vector<8x32xbf16>
    %c0_1 = arith.constant 0 : index
    %c0_2 = arith.constant 0 : index
    %c0_3 = arith.constant 0 : index
    %1 = vector.load %arg2[%c0_1, %c0_2, %c0_3] : memref<1x32x384xbf16, #tpu.memory_space<vmem>>, vector<1x32x384xbf16>
    %2 = vector.shape_cast %1 : vector<1x32x384xbf16> to vector<32x384xbf16>
    %cst = arith.constant dense<0.000000e+00> : vector<8x384xf32>
    %3 = tpu.matmul %0, %2, %cst {dimension_numbers = #tpu.dot_dimension_numbers<[1], [0], [0], [1], [0, 0, 1, 1], [], []>} : vector<8x32xbf16>, vector<32x384xbf16>, vector<8x384xf32> -> vector<8x384xf32>
    %4 = vector.extract_strided_slice %3 {offsets = [0, 0], sizes = [8, 128], strides = [1, 1]} : vector<8x384xf32> to vector<8x128xf32>
    %5 = vector.extract_strided_slice %3 {offsets = [0, 128], sizes = [8, 128], strides = [1, 1]} : vector<8x384xf32> to vector<8x128xf32>
    %6 = vector.extract_strided_slice %3 {offsets = [0, 256], sizes = [8, 128], strides = [1, 1]} : vector<8x384xf32> to vector<8x128xf32>
    %c0_4 = arith.constant 0 : index
    %c0_5 = arith.constant 0 : index
    %7 = vector.load %arg3[%c0_4, %c0_5] : memref<1x128xf32, #tpu.memory_space<vmem>>, vector<1x128xf32>
    %8 = vector.broadcast %7 : vector<1x128xf32> to vector<8x128xf32>
    %9 = arith.addf %6, %8 : vector<8x128xf32>
    %cst_6 = arith.constant dense<0.000000e+00> : vector<128xf32>
    %10 = vector.multi_reduction <add>, %4, %cst_6 [0] : vector<8x128xf32> to vector<128xf32>
    %11 = vector.shape_cast %10 : vector<128xf32> to vector<1x128xf32>
    %cst_7 = arith.constant 1.250000e-01 : f32
    %12 = vector.broadcast %cst_7 : f32 to vector<1x128xf32>
    %13 = arith.mulf %11, %12 : vector<1x128xf32>
    %14 = vector.broadcast %13 : vector<1x128xf32> to vector<8x128xf32>
    %15 = arith.subf %4, %14 : vector<8x128xf32>
    %16 = arith.mulf %15, %15 : vector<8x128xf32>
    %cst_8 = arith.constant dense<0.000000e+00> : vector<128xf32>
    %17 = vector.multi_reduction <add>, %16, %cst_8 [0] : vector<8x128xf32> to vector<128xf32>
    %18 = vector.shape_cast %17 : vector<128xf32> to vector<1x128xf32>
    %cst_9 = arith.constant 1.250000e-01 : f32
    %19 = vector.broadcast %cst_9 : f32 to vector<1x128xf32>
    %20 = arith.mulf %18, %19 : vector<1x128xf32>
    %cst_10 = arith.constant 9.99999974E-6 : f32
    %21 = vector.broadcast %cst_10 : f32 to vector<1x128xf32>
    %22 = arith.addf %20, %21 : vector<1x128xf32>
    %23 = math.rsqrt %22 : vector<1x128xf32>
    %24 = vector.broadcast %23 : vector<1x128xf32> to vector<8x128xf32>
    %25 = arith.mulf %15, %24 : vector<8x128xf32>
    %c0_11 = arith.constant 0 : index
    %c0_12 = arith.constant 0 : index
    %26 = vector.load %arg4[%c0_11, %c0_12] : memref<1x128xf32, #tpu.memory_space<vmem>>, vector<1x128xf32>
    %27 = vector.broadcast %26 : vector<1x128xf32> to vector<8x128xf32>
    %28 = arith.mulf %25, %27 : vector<8x128xf32>
    %c0_13 = arith.constant 0 : index
    %c0_14 = arith.constant 0 : index
    %29 = vector.load %arg5[%c0_13, %c0_14] : memref<1x128xf32, #tpu.memory_space<vmem>>, vector<1x128xf32>
    %30 = vector.broadcast %29 : vector<1x128xf32> to vector<8x128xf32>
    %31 = arith.addf %28, %30 : vector<8x128xf32>
    %32 = math.exp %31 : vector<8x128xf32>
    %c0_15 = arith.constant 0 : index
    %c0_16 = arith.constant 0 : index
    %33 = vector.load %arg8[%c0_15, %c0_16] : memref<8x128xf32, #tpu.memory_space<vmem>>, vector<8x128xf32>
    tpu.vector_store %arg8[%c0_15, %c0_16], %32 {strides = array<i32>} : memref<8x128xf32, #tpu.memory_space<vmem>>, vector<8x128xf32>,
    %cst_17 = arith.constant dense<0.000000e+00> : vector<128xf32>
    %34 = vector.multi_reduction <add>, %5, %cst_17 [0] : vector<8x128xf32> to vector<128xf32>
    %35 = vector.shape_cast %34 : vector<128xf32> to vector<1x128xf32>
    %cst_18 = arith.constant 1.250000e-01 : f32
    %36 = vector.broadcast %cst_18 : f32 to vector<1x128xf32>
    %37 = arith.mulf %35, %36 : vector<1x128xf32>
    %38 = vector.broadcast %37 : vector<1x128xf32> to vector<8x128xf32>
    %39 = arith.subf %5, %38 : vector<8x128xf32>
    %40 = arith.mulf %39, %39 : vector<8x128xf32>
    %cst_19 = arith.constant dense<0.000000e+00> : vector<128xf32>
    %41 = vector.multi_reduction <add>, %40, %cst_19 [0] : vector<8x128xf32> to vector<128xf32>
    %42 = vector.shape_cast %41 : vector<128xf32> to vector<1x128xf32>
    %cst_20 = arith.constant 1.250000e-01 : f32
    %43 = vector.broadcast %cst_20 : f32 to vector<1x128xf32>
    %44 = arith.mulf %42, %43 : vector<1x128xf32>
    %cst_21 = arith.constant 9.99999974E-6 : f32
    %45 = vector.broadcast %cst_21 : f32 to vector<1x128xf32>
    %46 = arith.addf %44, %45 : vector<1x128xf32>
    %47 = math.rsqrt %46 : vector<1x128xf32>
    %48 = vector.broadcast %47 : vector<1x128xf32> to vector<8x128xf32>
    %49 = arith.mulf %39, %48 : vector<8x128xf32>
    %c0_22 = arith.constant 0 : index
    %c0_23 = arith.constant 0 : index
    %50 = vector.load %arg6[%c0_22, %c0_23] : memref<1x128xf32, #tpu.memory_space<vmem>>, vector<1x128xf32>
    %51 = vector.broadcast %50 : vector<1x128xf32> to vector<8x128xf32>
    %52 = arith.mulf %49, %51 : vector<8x128xf32>
    %c0_24 = arith.constant 0 : index
    %c0_25 = arith.constant 0 : index
    %53 = vector.load %arg7[%c0_24, %c0_25] : memref<1x128xf32, #tpu.memory_space<vmem>>, vector<1x128xf32>
    %54 = vector.broadcast %53 : vector<1x128xf32> to vector<8x128xf32>
    %55 = arith.addf %52, %54 : vector<8x128xf32>
    %cst_26 = arith.constant 0.000000e+00 : f32
    %56 = vector.broadcast %cst_26 : f32 to vector<8x128xf32>
    %57 = arith.maximumf %55, %56 : vector<8x128xf32>
    %58 = math.absf %55 : vector<8x128xf32>
    %cst_27 = arith.constant 0.000000e+00 : f32
    %59 = vector.broadcast %cst_27 : f32 to vector<8x128xf32>
    %60 = arith.subf %59, %58 : vector<8x128xf32>
    %61 = math.exp %60 : vector<8x128xf32>
    %62 = math.log1p %61 : vector<8x128xf32>
    %63 = arith.addf %57, %62 : vector<8x128xf32>
    %c0_28 = arith.constant 0 : index
    %c0_29 = arith.constant 0 : index
    %64 = vector.load %arg9[%c0_28, %c0_29] : memref<8x128xf32, #tpu.memory_space<vmem>>, vector<8x128xf32>
    tpu.vector_store %arg9[%c0_28, %c0_29], %63 {strides = array<i32>} : memref<8x128xf32, #tpu.memory_space<vmem>>, vector<8x128xf32>,
    %c0_30 = arith.constant 0 : index
    %c0_31 = arith.constant 0 : index
    %65 = vector.load %arg10[%c0_30, %c0_31] : memref<8x128xf32, #tpu.memory_space<vmem>>, vector<8x128xf32>
    tpu.vector_store %arg10[%c0_30, %c0_31], %9 {strides = array<i32>} : memref<8x128xf32, #tpu.memory_space<vmem>>, vector<8x128xf32>,
    return
  }
  func.func @transform_0(%arg0: i32) -> (i32, i32) {
    %c0_i32 = arith.constant 0 : i32
    %c0_i32_0 = arith.constant 0 : i32
    %c0_i32_1 = arith.constant 0 : i32
    return %c0_i32, %c0_i32_0 : i32, i32
  }
  func.func @transform_1(%arg0: i32) -> (i32, i32, i32) {
    %c0_i32 = arith.constant 0 : i32
    %c0_i32_0 = arith.constant 0 : i32
    %c0_i32_1 = arith.constant 0 : i32
    return %arg0, %c0_i32, %c0_i32_0 : i32, i32, i32
  }
  func.func @transform_2(%arg0: i32) -> (i32, i32) {
    %c0_i32 = arith.constant 0 : i32
    %c0_i32_0 = arith.constant 0 : i32
    return %c0_i32, %arg0 : i32, i32
  }
  func.func @transform_3(%arg0: i32) -> (i32, i32) {
    %c0_i32 = arith.constant 0 : i32
    %c0_i32_0 = arith.constant 0 : i32
    return %c0_i32, %arg0 : i32, i32
  }
  func.func @transform_4(%arg0: i32) -> (i32, i32) {
    %c0_i32 = arith.constant 0 : i32
    %c0_i32_0 = arith.constant 0 : i32
    return %c0_i32, %arg0 : i32, i32
  }
  func.func @transform_5(%arg0: i32) -> (i32, i32) {
    %c0_i32 = arith.constant 0 : i32
    %c0_i32_0 = arith.constant 0 : i32
    return %c0_i32, %arg0 : i32, i32
  }
  func.func @transform_6(%arg0: i32) -> (i32, i32) {
    %c0_i32 = arith.constant 0 : i32
    %c0_i32_0 = arith.constant 0 : i32
    return %c0_i32, %arg0 : i32, i32
  }
  func.func @transform_7(%arg0: i32) -> (i32, i32) {
    %c0_i32 = arith.constant 0 : i32
    %c0_i32_0 = arith.constant 0 : i32
    return %c0_i32, %arg0 : i32, i32
  }
  func.func @transform_8(%arg0: i32) -> (i32, i32) {
    %c0_i32 = arith.constant 0 : i32
    %c0_i32_0 = arith.constant 0 : i32
    return %c0_i32, %arg0 : i32, i32
  }
  func.func @transform_9(%arg0: i32) -> (i32, i32) {
    %c0_i32 = arith.constant 0 : i32
    %c0_i32_0 = arith.constant 0 : i32
    return %c0_i32, %arg0 : i32, i32
  }
}

</mosaic_0001>

<llo_original>
// kernel: tpu_custom_call.1
$region0: #{tpu_custom_call.1}
  #allocation0 [shape = 'u32[]', space=smem, size = 0x4, offset = 0x4, fixed_abs, tag = 'smem constant byte address 0x4 - core index']
  #allocation1 [shape = 'u32[144,128]{1,0:T(1,128)}', space=vmem, size = 0x12000, scoped, tag = 'internal scratch']
  %s0 = inlined_call_operand.hbm [shape: bf16[8,32], index: 0, kind: input, shape index: {}]
  %s1 = inlined_call_operand.hbm [shape: bf16[1,32,384], index: 1, kind: input, shape index: {}]
  %s2 = inlined_call_operand.vmem [shape: f32[1,128], index: 2, kind: input, shape index: {}]
  %s3 = inlined_call_operand.vmem [shape: f32[1,128], index: 3, kind: input, shape index: {}]
  %s4 = inlined_call_operand.vmem [shape: f32[1,128], index: 4, kind: input, shape index: {}]
  %s5 = inlined_call_operand.vmem [shape: f32[1,128], index: 5, kind: input, shape index: {}]
  %s6 = inlined_call_operand.vmem [shape: f32[1,128], index: 6, kind: input, shape index: {}]
  %s7 = inlined_call_operand.hbm [shape: f32[8,128], index: 7, kind: output, shape index: {0}]
  %s8 = inlined_call_operand.hbm [shape: f32[8,128], index: 8, kind: output, shape index: {1}]
  %s9 = inlined_call_operand.hbm [shape: f32[8,128], index: 9, kind: output, shape index: {2}]
  %10 = xla_tuple %s7, %s8, %s9
  %s11 = sld [smem:[#allocation0]]
  $region62: #{tpu_custom_call.1} parent=0
    _
  %s13 = ssub.s32 1, %s11
  %s14 = scalar_select 0, %s13, %s11
  $region1: #{tpu_custom_call.1} parent=0
    #allocation2 [shape = 'u8[2048]{0}', space=vmem, size = 0x800, scoped, tag = 'input window, operand 0, single buffered']
    #allocation3 [shape = 's32[1]{0}', space=sflag, size = 0x4, scoped, tag = 'scoped memory for tpu_custom_call.1']
    #allocation4 [shape = 's32[1]{0}', space=sflag, size = 0x4, scoped, tag = 'scoped memory for tpu_custom_call.1']
    #allocation5 [shape = 'u8[24576]{0}', space=vmem, size = 0x6000, scoped, tag = 'input window, operand 1, single buffered']
    #allocation6 [shape = 's32[1]{0}', space=sflag, size = 0x4, scoped, tag = 'scoped memory for tpu_custom_call.1']
    #allocation7 [shape = 'u8[4096]{0}', space=vmem, size = 0x1000, scoped, tag = 'output window, operand 0, single buffered']
    #allocation8 [shape = 'u8[4096]{0}', space=vmem, size = 0x1000, scoped, tag = 'output window, operand 1, single buffered']
    #allocation9 [shape = 's32[1]{0}', space=sflag, size = 0x4, scoped, tag = 'scoped memory for tpu_custom_call.1']
    #allocation10 [shape = 'u8[4096]{0}', space=vmem, size = 0x1000, scoped, tag = 'output window, operand 2, single buffered']
    %15 = vsyncpa [#allocation3], 0
    %16 = vsyncpa [#allocation6], 0
    %17 = vsyncpa [#allocation4], 0
    %18 = vsyncpa [#allocation9], 0
    // Predicated region
    $region2: #{tpu_custom_call.1} parent=1 // pred_check
      _
    $region3: #{tpu_custom_call.1} parent=1 // pred_check_branch
      %20 = sbr.rel (0) target = $region5
    $region4: #{tpu_custom_call.1} parent=1 // pred_region
      %s22 = ssub.s32 64, 64
      %23 = vsyncadd [#allocation3], %s22
      %s25 = sshll.u32 [#allocation2], 4
      %s26 = int_to_ptr.vmem [resolvable:$true] %s25
      %28 = dma.hbm_to_vmem [thread:$0]  %s0, 64, %s26, [#allocation3]
    $region5: #{tpu_custom_call.1} parent=1 // pred_fallthru
      _
    // Predicated region
    $region6: #{tpu_custom_call.1} parent=1 // pred_check
      _
    $region7: #{tpu_custom_call.1} parent=1 // pred_check_branch
      %30 = sbr.rel (0) target = $region9
    $region8: #{tpu_custom_call.1} parent=1 // pred_region
      %s32 = ssub.s32 768, 768
      %33 = vsyncadd [#allocation6], %s32
      %s34 = sshll.u32 [#allocation5], 4
      %s35 = int_to_ptr.vmem [resolvable:$true] %s34
      %40 = dma.hbm_to_vmem [thread:$0]  %s1, 768, %s35, [#allocation6], 192, 192, 12
    $region9: #{tpu_custom_call.1} parent=1 // pred_fallthru
      _
    // Predicated region
    $region10: #{tpu_custom_call.1} parent=1 // pred_check
      _
    $region11: #{tpu_custom_call.1} parent=1 // pred_check_branch
      %42 = sbr.rel (0) target = $region13
    $region12: #{tpu_custom_call.1} parent=1 // pred_region
      _
    $region13: #{tpu_custom_call.1} parent=1 // pred_fallthru
      _
    // Predicated region
    $region14: #{tpu_custom_call.1} parent=1 // pred_check
      _
    $region15: #{tpu_custom_call.1} parent=1 // pred_check_branch
      %44 = sbr.rel (0) target = $region17
    $region16: #{tpu_custom_call.1} parent=1 // pred_region
      _
    $region17: #{tpu_custom_call.1} parent=1 // pred_fallthru
      _
    // Predicated region
    $region18: #{tpu_custom_call.1} parent=1 // pred_check
      _
    $region19: #{tpu_custom_call.1} parent=1 // pred_check_branch
      %46 = sbr.rel (0) target = $region21
    $region20: #{tpu_custom_call.1} parent=1 // pred_region
      _
    $region21: #{tpu_custom_call.1} parent=1 // pred_fallthru
      _
    // Predicated region
    $region22: #{tpu_custom_call.1} parent=1 // pred_check
      _
    $region23: #{tpu_custom_call.1} parent=1 // pred_check_branch
      %48 = sbr.rel (0) target = $region25
    $region24: #{tpu_custom_call.1} parent=1 // pred_region
      _
    $region25: #{tpu_custom_call.1} parent=1 // pred_fallthru
      _
    // Predicated region
    $region26: #{tpu_custom_call.1} parent=1 // pred_check
      _
    $region27: #{tpu_custom_call.1} parent=1 // pred_check_branch
      %50 = sbr.rel (0) target = $region29
    $region28: #{tpu_custom_call.1} parent=1 // pred_region
      _
    $region29: #{tpu_custom_call.1} parent=1 // pred_fallthru
      _
    // Predicated region
    $region30: #{tpu_custom_call.1} parent=1 // pred_check
      _
    $region31: #{tpu_custom_call.1} parent=1 // pred_check_branch
      %52 = sbr.rel (0) target = $region33
    $region32: #{tpu_custom_call.1} parent=1 // pred_region
      %53 = dma.done [#allocation3], 64
    $region33: #{tpu_custom_call.1} parent=1 // pred_fallthru
      _
    // Predicated region
    $region34: #{tpu_custom_call.1} parent=1 // pred_check
      _
    $region35: #{tpu_custom_call.1} parent=1 // pred_check_branch
      %55 = sbr.rel (0) target = $region37
    $region36: #{tpu_custom_call.1} parent=1 // pred_region
      %56 = dma.done [#allocation6], 768
    $region37: #{tpu_custom_call.1} parent=1 // pred_fallthru
      _
    %v58 = vld [vmem:[#allocation2] sm:$0xf]
    %v59 = vld [vmem:[#allocation5] sm:$0xff]
    %v60 = vld [vmem:[#allocation5 + $0x8] sm:$0xf]
    %v61 = vld [vmem:[#allocation5 + $0xc] sm:$0xff]
    %v62 = vld [vmem:[#allocation5 + $0x14] sm:$0xf]
    %v63 = vld [vmem:[#allocation5 + $0x18] sm:$0xff]
    %v64 = vld [vmem:[#allocation5 + $0x20] sm:$0xf]
    %v65 = vld [vmem:[#allocation5 + $0x24] sm:$0xff]
    %v66 = vld [vmem:[#allocation5 + $0x2c] sm:$0xf]
    %v75 = vunpack.c.l.b16 %v59
    %v76 = vunpack.c.h.b16 %v59
    %v77 = vunpack.c.l.b16 %v60
    %v78 = vunpack.c.l.b16 %v61
    %v79 = vunpack.c.h.b16 %v61
    %v80 = vunpack.c.l.b16 %v62
    %v81 = vunpack.c.l.b16 %v63
    %v82 = vunpack.c.h.b16 %v63
    %v83 = vunpack.c.l.b16 %v64
    %v84 = vunpack.c.l.b16 %v65
    %v85 = vunpack.c.h.b16 %v65
    %v86 = vunpack.c.l.b16 %v66
    %v87 = vpack.c.b16 %v78, %v75
    %v88 = vpack.c.b16 %v79, %v76
    %v89 = vpack.c.b16 %v80, %v77
    %v90 = vpack.c.b16 %v84, %v81
    %v91 = vpack.c.b16 %v85, %v82
    %v92 = vpack.c.b16 %v86, %v83
    %vm99 = vcmask 261120
    %v101 = vsel %vm99, %v58, 0
    %103 = vmatprep.subr.bf16.mxu0 %v88
    %104 = vmatpush1.bf16.msra.mxu0 %v87
    %105 = vmatprep.subr.bf16.mxu0 %v91
    %106 = vmatpush1.bf16.msra.mxu0 %v90
    %107 = vmatprep.subr.bf16.mxu0 0
    %108 = vmatpush1.bf16.msra.mxu0 0
    %109 = vmatprep.subr.bf16.mxu0 0
    %110 = vmatpush1.bf16.msra.mxu0 0
    %111 = vmatprep.subr.bf16.mxu0 0
    %112 = vmatpush1.bf16.msra.mxu0 0
    %113 = vmatprep.subr.bf16.mxu0 0
    %114 = vmatpush1.bf16.msra.mxu0 0
    %115 = vmatprep.subr.bf16.mxu0 0
    %116 = vmatpush1.bf16.msra.mxu0 0
    %117 = vmatprep.subr.bf16.mxu0 0
    %118 = vmatpush1.bf16.msra.mxu0 0
    %119 = vmatprep.subr.bf16.mxu0 0
    %120 = vmatpush1.bf16.msra.mxu0 0
    %121 = vmatprep.subr.bf16.mxu0 0
    %122 = vmatpush1.bf16.msra.mxu0 0
    %123 = vmatprep.subr.bf16.mxu0 0
    %124 = vmatpush1.bf16.msra.mxu0 0
    %125 = vmatprep.subr.bf16.mxu0 0
    %126 = vmatpush1.bf16.msra.mxu0 0
    %127 = vmatprep.subr.bf16.mxu0 0
    %128 = vmatpush1.bf16.msra.mxu0 0
    %129 = vmatprep.subr.bf16.mxu0 0
    %130 = vmatpush1.bf16.msra.mxu0 0
    %131 = vmatprep.subr.bf16.mxu0 0
    %132 = vmatpush1.bf16.msra.mxu0 0
    %133 = vmatprep.subr.bf16.mxu0 0
    %134 = vmatpush1.bf16.msra.mxu0 0
    %135 = vmatprep.mubr.bf16.mxu0 0
    %136 = vmatmul.mubr.bf16.gmra.mrb[0].mxu0 %v101
    %v137 = vpop.f32.mrb[0].mxu0
    %v138 = vadd.f32 0.0, %v137
    %v139 = vpop.f32.mrb[0].mxu0
    %v140 = vadd.f32 0.0, %v139
    %v141 = vpop.f32.mrb[0].mxu0
    %v142 = vpop.f32.mrb[0].mxu0
    %143 = vdwg.mxu0
    %144 = vmatprep.subr.bf16.mxu0 0
    %145 = vmatpush1.bf16.msra.mxu0 %v89
    %146 = vmatprep.subr.bf16.mxu0 0
    %147 = vmatpush1.bf16.msra.mxu0 %v92
    %148 = vmatprep.subr.bf16.mxu0 0
    %149 = vmatpush1.bf16.msra.mxu0 0
    %150 = vmatprep.subr.bf16.mxu0 0
    %151 = vmatpush1.bf16.msra.mxu0 0
    %152 = vmatprep.subr.bf16.mxu0 0
    %153 = vmatpush1.bf16.msra.mxu0 0
    %154 = vmatprep.subr.bf16.mxu0 0
    %155 = vmatpush1.bf16.msra.mxu0 0
    %156 = vmatprep.subr.bf16.mxu0 0
    %157 = vmatpush1.bf16.msra.mxu0 0
    %158 = vmatprep.subr.bf16.mxu0 0
    %159 = vmatpush1.bf16.msra.mxu0 0
    %160 = vmatprep.subr.bf16.mxu0 0
    %161 = vmatpush1.bf16.msra.mxu0 0
    %162 = vmatprep.subr.bf16.mxu0 0
    %163 = vmatpush1.bf16.msra.mxu0 0
    %164 = vmatprep.subr.bf16.mxu0 0
    %165 = vmatpush1.bf16.msra.mxu0 0
    %166 = vmatprep.subr.bf16.mxu0 0
    %167 = vmatpush1.bf16.msra.mxu0 0
    %168 = vmatprep.subr.bf16.mxu0 0
    %169 = vmatpush1.bf16.msra.mxu0 0
    %170 = vmatprep.subr.bf16.mxu0 0
    %171 = vmatpush1.bf16.msra.mxu0 0
    %172 = vmatprep.subr.bf16.mxu0 0
    %173 = vmatpush1.bf16.msra.mxu0 0
    %174 = vmatprep.subr.bf16.mxu0 0
    %175 = vmatpush1.bf16.msra.mxu0 0
    %176 = vmatprep.mubr.bf16.mxu0 0
    %177 = vmatmul.mubr.bf16.gmra.mrb[0].mxu0 %v101
    %v178 = vpop.f32.mrb[0].mxu0
    %v179 = vadd.f32 0.0, %v178
    %v180 = vpop.f32.mrb[0].mxu0
    %v181 = vpop.f32.mrb[0].mxu0
    %v182 = vpop.f32.mrb[0].mxu0
    %183 = vdwg.mxu0
    %v184 = vld [vmem:[%s2] sm:$0x1]
    %v186 = vlaneseq
    %v187 = vshrl.u32 %v186, 7
    %v188 = vsub.s32 0, %v187
    %v189 = vrot.slane %v184, %v188
    %v191 = vadd.f32 %v179, %v189
    %v192 = vrot.slane %v138, 4
    %v193 = vadd.f32 %v138, %v192
    %v194 = vrot.slane %v193, 2
    %v195 = vadd.f32 %v193, %v194
    %v196 = vrot.slane %v195, 1
    %v197 = vadd.f32 %v195, %v196
    %v198 = vmul.f32 %v197, 0.125
    %v199 = vsub.f32 %v138, %v198
    %v200 = vmul.f32 %v199, %v199
    %v201 = vrot.slane %v200, 4
    %v202 = vadd.f32 %v200, %v201
    %v203 = vrot.slane %v202, 2
    %v204 = vadd.f32 %v202, %v203
    %v205 = vrot.slane %v204, 1
    %v206 = vadd.f32 %v204, %v205
    %v207 = vmul.f32 %v206, 0.125
    %v208 = vadd.f32 %v207, 1e-05
    %v209 = vrsqrt.pop %v208
    %v210 = vmul.f32 %v199, %v209
    %v211 = vld [vmem:[%s3] sm:$0x1]
    %v213 = vlaneseq
    %v214 = vshrl.u32 %v213, 7
    %v215 = vsub.s32 0, %v214
    %v216 = vrot.slane %v211, %v215
    %v218 = vmul.f32 %v210, %v216
    %v219 = vld [vmem:[%s4] sm:$0x1]
    %v221 = vlaneseq
    %v222 = vshrl.u32 %v221, 7
    %v223 = vsub.s32 0, %v222
    %v224 = vrot.slane %v219, %v223
    %v226 = vadd.f32 %v218, %v224
    %v227 = vmul.f32 %v226, 1.442695
    %v228 = vpow.pop %v227
    %229 = vst [vmem:[#allocation7] sm:$0xff] %v228
    %v230 = vrot.slane %v140, 4
    %v231 = vadd.f32 %v140, %v230
    %v232 = vrot.slane %v231, 2
    %v233 = vadd.f32 %v231, %v232
    %v234 = vrot.slane %v233, 1
    %v235 = vadd.f32 %v233, %v234
    %v236 = vmul.f32 %v235, 0.125
    %v237 = vsub.f32 %v140, %v236
    %v238 = vmul.f32 %v237, %v237
    %v239 = vrot.slane %v238, 4
    %v240 = vadd.f32 %v238, %v239
    %v241 = vrot.slane %v240, 2
    %v242 = vadd.f32 %v240, %v241
    %v243 = vrot.slane %v242, 1
    %v244 = vadd.f32 %v242, %v243
    %v245 = vmul.f32 %v244, 0.125
    %v246 = vadd.f32 %v245, 1e-05
    %v247 = vrsqrt.pop %v246
    %v248 = vmul.f32 %v237, %v247
    %v249 = vld [vmem:[%s5] sm:$0x1]
    %v251 = vlaneseq
    %v252 = vshrl.u32 %v251, 7
    %v253 = vsub.s32 0, %v252
    %v254 = vrot.slane %v249, %v253
    %v256 = vmul.f32 %v248, %v254
    %v257 = vld [vmem:[%s6] sm:$0x1]
    %v259 = vlaneseq
    %v260 = vshrl.u32 %v259, 7
    %v261 = vsub.s32 0, %v260
    %v262 = vrot.slane %v257, %v261
    %v264 = vadd.f32 %v256, %v262
    %v265 = vmax.f32 %v264, 0.0
    %v266 = vand.u32 2147483647, %v264
    %v267 = vsub.f32 0.0, %v266
    %v268 = vmul.f32 %v267, 1.442695
    %v269 = vpow.pop %v268
    %v270 = vadd.f32 %v269, 1.0
    %v271 = vlog2.pop %v270
    %v272 = vmul.f32 %v271, 0.6931472
    %v273 = vmul.f32 -0.5, %v269
    %v274 = vadd.f32 %v273, 1.0
    %v275 = vmul.f32 %v274, %v269
    %v276 = vand.u32 2147483647, %v269
    %vm277 = vcmp.lt.f32.partialorder %v276, 0.0004427343
    %v278 = vsel %vm277, %v275, %v272
    %v279 = vadd.f32 %v265, %v278
    %280 = vst [vmem:[#allocation8] sm:$0xff] %v279
    %281 = vst [vmem:[#allocation10] sm:$0xff] %v191
    // Predicated region
    $region38: #{tpu_custom_call.1} parent=1 // pred_check
      _
    $region39: #{tpu_custom_call.1} parent=1 // pred_check_branch
      %283 = sbr.rel (0) target = $region41
    $region40: #{tpu_custom_call.1} parent=1 // pred_region
      %s285 = ssub.s32 128, 128
      %286 = vsyncadd [#allocation4], %s285
      %s288 = sshll.u32 [#allocation7], 4
      %s289 = int_to_ptr.vmem [resolvable:$true] %s288
      %291 = dma.vmem_to_hbm [thread:$0]  %s289, 128, %s7, [#allocation4]
    $region41: #{tpu_custom_call.1} parent=1 // pred_fallthru
      _
    // Predicated region
    $region42: #{tpu_custom_call.1} parent=1 // pred_check
      _
    $region43: #{tpu_custom_call.1} parent=1 // pred_check_branch
      %293 = sbr.rel (0) target = $region45
    $region44: #{tpu_custom_call.1} parent=1 // pred_region
      %s295 = ssub.s32 128, 128
      %296 = vsyncadd [#allocation9], %s295
      %s298 = sshll.u32 [#allocation8], 4
      %s299 = int_to_ptr.vmem [resolvable:$true] %s298
      %301 = dma.vmem_to_hbm [thread:$0]  %s299, 128, %s8, [#allocation9]
    $region45: #{tpu_custom_call.1} parent=1 // pred_fallthru
      _
    // Predicated region
    $region46: #{tpu_custom_call.1} parent=1 // pred_check
      _
    $region47: #{tpu_custom_call.1} parent=1 // pred_check_branch
      %303 = sbr.rel (0) target = $region49
    $region48: #{tpu_custom_call.1} parent=1 // pred_region
      %s305 = ssub.s32 128, 128
      %306 = vsyncadd [#allocation9], %s305
      %s308 = sshll.u32 [#allocation10], 4
      %s309 = int_to_ptr.vmem [resolvable:$true] %s308
      %311 = dma.vmem_to_hbm [thread:$0]  %s309, 128, %s9, [#allocation9]
    $region49: #{tpu_custom_call.1} parent=1 // pred_fallthru
      _
    // Predicated region
    $region50: #{tpu_custom_call.1} parent=1 // pred_check
      _
    $region51: #{tpu_custom_call.1} parent=1 // pred_check_branch
      %313 = sbr.rel (0) target = $region53
    $region52: #{tpu_custom_call.1} parent=1 // pred_region
      %314 = dma.done [#allocation4], 128
    $region53: #{tpu_custom_call.1} parent=1 // pred_fallthru
      _
    // Predicated region
    $region54: #{tpu_custom_call.1} parent=1 // pred_check
      _
    $region55: #{tpu_custom_call.1} parent=1 // pred_check_branch
      %316 = sbr.rel (0) target = $region57
    $region56: #{tpu_custom_call.1} parent=1 // pred_region
      %317 = dma.done [#allocation9], 128
    $region57: #{tpu_custom_call.1} parent=1 // pred_fallthru
      _
    // Predicated region
    $region58: #{tpu_custom_call.1} parent=1 // pred_check
      _
    $region59: #{tpu_custom_call.1} parent=1 // pred_check_branch
      %319 = sbr.rel (0) target = $region61
    $region60: #{tpu_custom_call.1} parent=1 // pred_region
      %320 = dma.done [#allocation9], 128
    $region61: #{tpu_custom_call.1} parent=1 // pred_fallthru
      _
    %321 = vsyncpa [#allocation3], 1
    %322 = vsyncpa [#allocation6], 1
    %323 = vsyncpa [#allocation4], 1
    %324 = vsyncpa [#allocation9], 1

</llo_original>
